<compile_context>
chip_gen: v6e
topology: v6e:2x2x1
jax: 0.10.0
libtpu: 0.0.40
codegen_flags: <defaults>
</compile_context>

<pallas_src>
import functools

import jax
import jax.numpy as jnp
from jax.experimental import pallas as pl
from jax.experimental.pallas import tpu as pltpu


def _round_up(x, m):
    return ((x + m - 1) // m) * m


def _vmem_capacity_bytes():
    """Physical VMEM per TensorCore; conservative 64 MiB (v7x) fallback."""
    try:
        info = pltpu.get_tpu_info()
        cap = getattr(info, "vmem_capacity_bytes", None)
        if cap:
            return int(cap)
    except Exception:
        pass
    return 64 << 20


def _choose_tile_and_pad(dim, target, align):
    """Pick a tile for `dim` and the (possibly padded) array extent.

    Returns (tile, padded_dim).  dim <= target -> one full-dim block (allowed
    by the (8,128) rule).  Otherwise use the largest `align`-multiple divisor
    of dim that is <= target; if none exists, pad dim up to a multiple of
    `align` so an aligned tile always exists (never fall back to a huge
    full-dim block that could blow the VMEM budget).
    """
    if dim <= target:
        return dim, dim
    t = (target // align) * align
    while t >= align:
        if dim % t == 0:
            return t, dim
        t -= align
    padded = _round_up(dim, align)
    t = (target // align) * align
    while padded % t != 0:
        t -= align
    return t, padded


def _apply_activation(y, activation, slope):
    if activation == "relu":
        return jnp.maximum(y, 0.0)
    if activation == "leaky_relu":
        # nn.LeakyReLU(slope); the module's own default is slope=-0.01
        # (sign kept exactly as in the PyTorch spec).
        return jnp.where(y > 0.0, y, y * slope)
    raise ValueError(f"unsupported activation: {activation}")


def _kernel_acc(x_ref, w_ref, b_ref, o_ref, acc_ref, *, activation, slope):
    # x_ref : (tile_m, tile_k)   w_ref : (tile_k, tile_n)   b_ref : (1, tile_n)
    # o_ref : (tile_m, tile_n)   acc_ref: (tile_m, tile_n) f32, lives across k
    k = pl.program_id(2)

    @pl.when(k == 0)
    def _():
        # Fold the bias into the accumulator init: saves a (tm,tn) VPU add
        # in the finalize step.
        acc_ref[...] = jnp.broadcast_to(
            b_ref[...].astype(jnp.float32), acc_ref.shape)

    acc_ref[...] += jnp.dot(x_ref[...], w_ref[...],
                            preferred_element_type=jnp.float32)

    @pl.when(k == pl.num_programs(2) - 1)
    def _():
        y = _apply_activation(acc_ref[...], activation, slope)
        o_ref[...] = y.astype(o_ref.dtype)


def _kernel_noacc(x_ref, w_ref, b_ref, o_ref, *, activation, slope):
    # Single K step: no VMEM accumulator round-trips at all.
    y = jnp.dot(x_ref[...], w_ref[...], preferred_element_type=jnp.float32)
    y = y + b_ref[...].astype(jnp.float32)
    y = _apply_activation(y, activation, slope)
    o_ref[...] = y.astype(o_ref.dtype)


def prepare_linear_params(weight, bias, compute_dtype=None):
    """One-time conversion of PyTorch nn.Linear params for the kernel.

    Transposes (out_dim, in_dim) -> (in_dim, out_dim) so the MXU gets a
    K-major RHS with no per-tile transpose, and optionally casts the weight to
    the compute dtype (e.g. bf16) once at load time instead of per call.
    """
    w_kn = jnp.asarray(weight).T          # eager: materialized once
    b = jnp.asarray(bias)
    if compute_dtype is not None:
        w_kn = w_kn.astype(compute_dtype)
    return w_kn, b


def linear_block(x, weight_kn, bias, *, activation="relu", slope=-0.01,
                 compute_dtype=None, tile_m=None, tile_n=None, tile_k=None):
    """Forward pass of LinearBlock.

    x:         (B, input_dim)
    weight_kn: (input_dim, output_dim)  -- K-major layout from prepare_linear_params
    bias:      (output_dim,)
    returns    (B, output_dim) in x's original dtype.

    For best bandwidth, prepare weight_kn in bf16 once (compute_dtype=bf16 in
    prepare_linear_params) and pass compute_dtype=jnp.bfloat16 here so x is
    cast *before* the DMA; accumulation stays f32.
    """
    B, K = x.shape
    Kw, N = weight_kn.shape
    assert K == Kw, "weight/input dim mismatch"

    orig_dtype = x.dtype
    if compute_dtype is not None:
        if x.dtype != compute_dtype:
            x = x.astype(compute_dtype)
        if weight_kn.dtype != compute_dtype:
            # Prefer doing this once in prepare_linear_params.
            weight_kn = weight_kn.astype(compute_dtype)

    csize = jnp.dtype(x.dtype).itemsize
    wsize = jnp.dtype(weight_kn.dtype).itemsize
    bsize = jnp.dtype(bias.dtype).itemsize
    osize = jnp.dtype(orig_dtype).itemsize

    vmem_cap = _vmem_capacity_bytes()
    big_vmem = vmem_cap >= (100 << 20)        # v5e/v6e (128 MiB) vs v7x (64 MiB)

    # ---------------- K tiling (contraction dim, innermost grid axis) -------
    if tile_k is None:
        if csize <= 2:                         # bf16 compute
            k_target = 4096 if big_vmem else 2048
        else:                                  # f32 compute
            k_target = 2048 if big_vmem else 1024
        tile_k, Kp = _choose_tile_and_pad(K, k_target, 128)
    else:
        Kp = _round_up(K, tile_k)
    if Kp != K:                                # zero-pad: contributes 0 to dot
        x = jnp.pad(x, ((0, 0), (0, Kp - K)))
        weight_kn = jnp.pad(weight_kn, ((0, Kp - K), (0, 0)))

    # ---------------- N tiling (lane-dense output) ---------------------------
    if tile_n is None:
        tile_n, Np = _choose_tile_and_pad(N, 512, 128)
    else:
        Np = _round_up(N, tile_n)
    if Np != N:
        weight_kn = jnp.pad(weight_kn, ((0, 0), (0, Np - N)))
        bias = jnp.pad(bias, (0, Np - N))

    # ---------------- M tiling: single step up to 512 rows -------------------
    if tile_m is None:
        tile_m = min(512, _round_up(B, 8))
    grid_m = pl.cdiv(B, tile_m)
    Mp = grid_m * tile_m
    # Pad batch rows only when B is small (cheap copy); for large B rely on
    # the cdiv grid's masked edge handling (rows are independent).
    pad_m = (Mp != B) and (B <= 4096)
    if pad_m:
        x = jnp.pad(x, ((0, Mp - B), (0, 0)))
        m_out = Mp
    else:
        m_out = B

    grid_n = Np // tile_n
    grid_k = Kp // tile_k
    use_acc = grid_k > 1

    # ---------------- grid ordering: N outermost when M has one step --------
    if grid_m == 1 and grid_n > 1:
        grid = (grid_n, grid_m, grid_k)
        x_map = lambda n, m, k: (m, k)
        w_map = lambda n, m, k: (k, n)
        b_map = lambda n, m, k: (0, n)
        o_map = lambda n, m, k: (m, n)
    else:
        grid = (grid_m, grid_n, grid_k)
        x_map = lambda m, n, k: (m, k)
        w_map = lambda m, n, k: (k, n)
        b_map = lambda m, n, k: (0, n)
        o_map = lambda m, n, k: (m, n)

    # ---------------- VMEM budget: exact double-buffer count + slack --------
    blk_bytes = (
        2 * tile_m * tile_k * csize            # x  (double-buffered)
        + 2 * tile_k * tile_n * wsize          # weight
        + 2 * tile_n * bsize                   # bias
        + 2 * tile_m * tile_n * osize          # out
        + (tile_m * tile_n * 4 if use_acc else 0)  # f32 accumulator scratch
    )
    slack = 4 << 20                            # Mosaic internal scratch/sems
    vmem_limit = int(min(max(blk_bytes + slack, 8 << 20), int(vmem_cap * 0.8)))

    cost = pl.CostEstimate(
        flops=2 * m_out * Kp * Np,
        transcendentals=0,
        bytes_accessed=int(x.size * csize + weight_kn.size * wsize
                           + bias.size * bsize + m_out * Np * osize),
    )

    if use_acc:
        kernel = functools.partial(_kernel_acc, activation=activation, slope=slope)
        scratch = [pltpu.VMEM((tile_m, tile_n), jnp.float32)]
    else:
        kernel = functools.partial(_kernel_noacc, activation=activation, slope=slope)
        scratch = []

    out = pl.pallas_call(
        kernel,
        out_shape=jax.ShapeDtypeStruct((m_out, Np), orig_dtype),
        grid_spec=pltpu.PrefetchScalarGridSpec(
            num_scalar_prefetch=0,
            grid=grid,
            in_specs=[
                pl.BlockSpec((tile_m, tile_k), x_map),
                pl.BlockSpec((tile_k, tile_n), w_map),
                pl.BlockSpec((1, tile_n), b_map),
            ],
            out_specs=pl.BlockSpec((tile_m, tile_n), o_map),
            scratch_shapes=scratch,
        ),
        compiler_params=pltpu.CompilerParams(
            dimension_semantics=("parallel", "parallel", "arbitrary"),
            vmem_limit_bytes=vmem_limit,
        ),
        cost_estimate=cost,
    )(x, weight_kn, bias.reshape(1, Np))

    if m_out != B or Np != N:
        out = out[:B, :N]
    return out


def init_linear_params(key, input_dim, output_dim, dtype=jnp.float32):
    """Deterministic init matching nn.Linear's uniform(-1/sqrt(in), 1/sqrt(in))."""
    kw, kb = jax.random.split(key)
    bound = 1.0 / jnp.sqrt(jnp.asarray(input_dim, dtype))
    weight = jax.random.uniform(
        kw, (output_dim, input_dim), dtype, minval=-bound, maxval=bound)
    bias = jax.random.uniform(
        kb, (output_dim,), dtype, minval=-bound, maxval=bound)
    return weight, bias


if __name__ == "__main__":
    key = jax.random.PRNGKey(0)
    k_x, k_p = jax.random.split(key)

    B, input_dim, output_dim = 16, 32, 64
    x = jax.random.normal(k_x, (B, input_dim), jnp.float32)
    weight, bias = init_linear_params(k_p, input_dim, output_dim)  # PyTorch (out,in)
    w_kn, b = prepare_linear_params(weight, bias)                  # one-time (in,out)

    z = x @ weight.T + bias

    # f32 path, module-default activation='relu'
    out = jax.block_until_ready(linear_block(x, w_kn, b, activation="relu"))
    ref_relu = jnp.maximum(z, 0.0)
    assert out.shape == (B, output_dim)
    assert jnp.allclose(out, ref_relu, atol=1e-5, rtol=1e-5)

    # leaky_relu with the module's own default slope=-0.01
    out_lk = jax.block_until_ready(
        linear_block(x, w_kn, b, activation="leaky_relu", slope=-0.01))
    ref_lk = jnp.where(z > 0.0, z, z * -0.01)
    assert jnp.allclose(out_lk, ref_lk, atol=1e-5, rtol=1e-5)

    # bf16-compute / f32-accumulate path: casts happen in the wrapper /
    # at prepare time (before the DMA), looser tolerance.
    w_kn_bf16, _ = prepare_linear_params(weight, bias, compute_dtype=jnp.bfloat16)
    out_bf16 = jax.block_until_ready(
        linear_block(x, w_kn_bf16, b, activation="relu",
                     compute_dtype=jnp.bfloat16))
    assert out_bf16.dtype == jnp.float32
    assert jnp.allclose(out_bf16, ref_relu, atol=5e-2, rtol=5e-2)

    # odd batch size exercises the cdiv grid + (small-B) row-padding path
    x_odd = jax.random.normal(k_x, (B + 3, input_dim), jnp.float32)
    out_odd = jax.block_until_ready(linear_block(x_odd, w_kn, b))
    ref_odd = jnp.maximum(x_odd @ weight.T + bias, 0.0)
    assert out_odd.shape == (B + 3, output_dim)
    assert jnp.allclose(out_odd, ref_odd, atol=1e-5, rtol=1e-5)

    # exercise the K-accumulation (grid_k>1) path and the N-outermost
    # megacore grid ordering (grid_m==1, grid_n>1)
    input_dim2, output_dim2 = 256, 256
    x2 = jax.random.normal(k_x, (B, input_dim2), jnp.float32)
    weight2, bias2 = init_linear_params(k_p, input_dim2, output_dim2)
    w_kn2, b2 = prepare_linear_params(weight2, bias2)
    out2 = jax.block_until_ready(
        linear_block(x2, w_kn2, b2, tile_k=128, tile_n=128))
    ref2 = jnp.maximum(x2 @ weight2.T + bias2, 0.0)
    assert jnp.allclose(out2, ref2, atol=1e-4, rtol=1e-4)

    print("KERNEL_OK")
</pallas_src>

<mosaic_0001>
module attributes {stable_mosaic.version = 11 : i64} {
  func.func @_kernel_noacc(%arg0: i32, %arg1: i32, %arg2: i32, %arg3: memref<16x32xf32, #tpu.memory_space<vmem>>, %arg4: memref<32x64xf32, #tpu.memory_space<vmem>>, %arg5: memref<1x64xf32, #tpu.memory_space<vmem>>, %arg6: memref<16x64xf32, #tpu.memory_space<vmem>>) attributes {dimension_semantics = [#tpu.dimension_semantics<parallel>, #tpu.dimension_semantics<parallel>, #tpu.dimension_semantics<arbitrary>], iteration_bounds = array<i64: 1, 1, 1>, scalar_prefetch = 0 : i64, scratch_operands = 0 : i64, tpu.core_type = #tpu.core_type<tc>, window_params = [{transform_indices = @transform_0, window_bounds = array<i64: 16, 32>}, {transform_indices = @transform_1, window_bounds = array<i64: 32, 64>}, {transform_indices = @transform_2, window_bounds = array<i64: 1, 64>}, {transform_indices = @transform_3, window_bounds = array<i64: 16, 64>}]} {
    %c0 = arith.constant 0 : index
    %c0_0 = arith.constant 0 : index
    %0 = vector.load %arg3[%c0, %c0_0] : memref<16x32xf32, #tpu.memory_space<vmem>>, vector<16x32xf32>
    %c0_1 = arith.constant 0 : index
    %c0_2 = arith.constant 0 : index
    %1 = vector.load %arg4[%c0_1, %c0_2] : memref<32x64xf32, #tpu.memory_space<vmem>>, vector<32x64xf32>
    %cst = arith.constant dense<0.000000e+00> : vector<16x64xf32>
    %2 = tpu.matmul %0, %1, %cst {dimension_numbers = #tpu.dot_dimension_numbers<[1], [0], [0], [1], [0, 0, 1, 1], [], []>} : vector<16x32xf32>, vector<32x64xf32>, vector<16x64xf32> -> vector<16x64xf32>
    %c0_3 = arith.constant 0 : index
    %c0_4 = arith.constant 0 : index
    %3 = vector.load %arg5[%c0_3, %c0_4] : memref<1x64xf32, #tpu.memory_space<vmem>>, vector<1x64xf32>
    %4 = vector.broadcast %3 : vector<1x64xf32> to vector<16x64xf32>
    %5 = arith.addf %2, %4 : vector<16x64xf32>
    %cst_5 = arith.constant 0.000000e+00 : f32
    %6 = vector.broadcast %cst_5 : f32 to vector<16x64xf32>
    %7 = arith.maximumf %5, %6 : vector<16x64xf32>
    %c0_6 = arith.constant 0 : index
    %c0_7 = arith.constant 0 : index
    %8 = vector.load %arg6[%c0_6, %c0_7] : memref<16x64xf32, #tpu.memory_space<vmem>>, vector<16x64xf32>
    tpu.vector_store %arg6[%c0_6, %c0_7], %7 {strides = array<i32>} : memref<16x64xf32, #tpu.memory_space<vmem>>, vector<16x64xf32>,
    return
  }
  func.func @transform_0(%arg0: i32, %arg1: i32, %arg2: i32) -> (i32, i32) {
    %c0_i32 = arith.constant 0 : i32
    return %arg0, %arg2 : i32, i32
  }
  func.func @transform_1(%arg0: i32, %arg1: i32, %arg2: i32) -> (i32, i32) {
    %c0_i32 = arith.constant 0 : i32
    return %arg2, %arg1 : i32, i32
  }
  func.func @transform_2(%arg0: i32, %arg1: i32, %arg2: i32) -> (i32, i32) {
    %c0_i32 = arith.constant 0 : i32
    %c0_i32_0 = arith.constant 0 : i32
    return %c0_i32, %arg1 : i32, i32
  }
  func.func @transform_3(%arg0: i32, %arg1: i32, %arg2: i32) -> (i32, i32) {
    %c0_i32 = arith.constant 0 : i32
    return %arg0, %arg1 : i32, i32
  }
}

</mosaic_0001>

<llo_original>
// kernel: tpu_custom_call.1
$region0: #{tpu_custom_call.1}
  #allocation0 [shape = 'u32[]', space=smem, size = 0x4, offset = 0x4, fixed_abs, tag = 'smem constant byte address 0x4 - core index']
  #allocation1 [shape = 'u32[144,128]{1,0:T(1,128)}', space=vmem, size = 0x12000, scoped, tag = 'internal scratch']
  %s0 = inlined_call_operand.hbm [shape: f32[16,32], index: 0, kind: input, shape index: {}]
  %s1 = inlined_call_operand.hbm [shape: f32[32,64], index: 1, kind: input, shape index: {}]
  %s2 = inlined_call_operand.vmem [shape: f32[1,64], index: 2, kind: input, shape index: {}]
  %s3 = inlined_call_operand.hbm [shape: f32[16,64], index: 3, kind: output, shape index: {}]
  %s4 = sld [smem:[#allocation0]]
  $region30: #{tpu_custom_call.1} parent=0
    _
  %s6 = ssub.s32 1, %s4
  %s7 = scalar_select 0, %s6, %s4
  $region1: #{tpu_custom_call.1} parent=0
    #allocation2 [shape = 'u8[8192]{0}', space=vmem, size = 0x2000, scoped, tag = 'input window, operand 0, single buffered']
    #allocation3 [shape = 's32[1]{0}', space=sflag, size = 0x4, scoped, tag = 'scoped memory for tpu_custom_call.1']
    #allocation4 [shape = 's32[1]{0}', space=sflag, size = 0x4, scoped, tag = 'scoped memory for tpu_custom_call.1']
    #allocation5 [shape = 'u8[16384]{0}', space=vmem, size = 0x4000, scoped, tag = 'input window, operand 1, single buffered']
    #allocation6 [shape = 's32[1]{0}', space=sflag, size = 0x4, scoped, tag = 'scoped memory for tpu_custom_call.1']
    #allocation7 [shape = 'u8[8192]{0}', space=vmem, size = 0x2000, scoped, tag = 'output window, operand 0, single buffered']
    %8 = vsyncpa [#allocation3], 0
    %9 = vsyncpa [#allocation6], 0
    %10 = vsyncpa [#allocation4], 0
    // Predicated region
    $region2: #{tpu_custom_call.1} parent=1 // pred_check
      _
    $region3: #{tpu_custom_call.1} parent=1 // pred_check_branch
      %12 = sbr.rel (0) target = $region5
    $region4: #{tpu_custom_call.1} parent=1 // pred_region
      %s14 = ssub.s32 256, 256
      %15 = vsyncadd [#allocation3], %s14
      %s16 = sshll.u32 [#allocation2], 4
      %s17 = int_to_ptr.vmem [resolvable:$true] %s16
      %22 = dma.hbm_to_vmem [thread:$0]  %s0, 256, %s17, [#allocation3], 128, 128, 8
    $region5: #{tpu_custom_call.1} parent=1 // pred_fallthru
      _
    // Predicated region
    $region6: #{tpu_custom_call.1} parent=1 // pred_check
      _
    $region7: #{tpu_custom_call.1} parent=1 // pred_check_branch
      %24 = sbr.rel (0) target = $region9
    $region8: #{tpu_custom_call.1} parent=1 // pred_region
      %s26 = ssub.s32 512, 512
      %27 = vsyncadd [#allocation6], %s26
      %s28 = sshll.u32 [#allocation5], 4
      %s29 = int_to_ptr.vmem [resolvable:$true] %s28
      %34 = dma.hbm_to_vmem [thread:$0]  %s1, 512, %s29, [#allocation6], 128, 128, 8
    $region9: #{tpu_custom_call.1} parent=1 // pred_fallthru
      _
    // Predicated region
    $region10: #{tpu_custom_call.1} parent=1 // pred_check
      _
    $region11: #{tpu_custom_call.1} parent=1 // pred_check_branch
      %36 = sbr.rel (0) target = $region13
    $region12: #{tpu_custom_call.1} parent=1 // pred_region
      _
    $region13: #{tpu_custom_call.1} parent=1 // pred_fallthru
      _
    // Predicated region
    $region14: #{tpu_custom_call.1} parent=1 // pred_check
      _
    $region15: #{tpu_custom_call.1} parent=1 // pred_check_branch
      %38 = sbr.rel (0) target = $region17
    $region16: #{tpu_custom_call.1} parent=1 // pred_region
      %39 = dma.done [#allocation3], 256
    $region17: #{tpu_custom_call.1} parent=1 // pred_fallthru
      _
    // Predicated region
    $region18: #{tpu_custom_call.1} parent=1 // pred_check
      _
    $region19: #{tpu_custom_call.1} parent=1 // pred_check_branch
      %41 = sbr.rel (0) target = $region21
    $region20: #{tpu_custom_call.1} parent=1 // pred_region
      %42 = dma.done [#allocation6], 512
    $region21: #{tpu_custom_call.1} parent=1 // pred_fallthru
      _
    %v43 = vld [vmem:[#allocation2] sm:$0xff]
    %v44 = vld [vmem:[#allocation2 + $0x8] sm:$0xff]
    %v45 = vld [vmem:[#allocation5] sm:$0xff]
    %v46 = vld [vmem:[#allocation5 + $0x8] sm:$0xff]
    %v47 = vld [vmem:[#allocation5 + $0x10] sm:$0xff]
    %v48 = vld [vmem:[#allocation5 + $0x18] sm:$0xff]
    %v49 = vld [vmem:[%s2] sm:$0x1]
    %v51 = vlaneseq
    %v52 = vshrl.u32 %v51, 7
    %v53 = vsub.s32 0, %v52
    %v54 = vrot.slane %v49, %v53
    %vm56 = vcmask 261120
    %v58 = vsel %vm56, %v43, 0
    %v61 = vsel %vm56, %v44, 0
    %63 = vmatprep.subr.mxu0 0.0
    %64 = vmatpush1.msra.mxu0 0.0
    %65 = vmatprep.subr.mxu0 0.0
    %66 = vmatpush1.msra.mxu0 0.0
    %67 = vmatprep.subr.mxu0 0.0
    %68 = vmatpush1.msra.mxu0 0.0
    %69 = vmatprep.subr.mxu0 0.0
    %70 = vmatpush1.msra.mxu0 0.0
    %71 = vmatprep.subr.mxu0 0.0
    %72 = vmatpush1.msra.mxu0 0.0
    %73 = vmatprep.subr.mxu0 0.0
    %74 = vmatpush1.msra.mxu0 0.0
    %75 = vmatprep.subr.mxu0 0.0
    %76 = vmatpush1.msra.mxu0 0.0
    %77 = vmatprep.subr.mxu0 0.0
    %78 = vmatpush1.msra.mxu0 0.0
    %79 = vmatprep.subr.mxu0 0.0
    %80 = vmatpush1.msra.mxu0 0.0
    %81 = vmatprep.subr.mxu0 0.0
    %82 = vmatpush1.msra.mxu0 0.0
    %83 = vmatprep.subr.mxu0 0.0
    %84 = vmatpush1.msra.mxu0 0.0
    %85 = vmatprep.subr.mxu0 0.0
    %86 = vmatpush1.msra.mxu0 0.0
    %87 = vmatprep.subr.mxu0 0.0
    %88 = vmatpush1.msra.mxu0 %v48
    %89 = vmatprep.subr.mxu0 0.0
    %90 = vmatpush1.msra.mxu0 %v47
    %91 = vmatprep.subr.mxu0 0.0
    %92 = vmatpush1.msra.mxu0 %v46
    %93 = vmatprep.subr.mxu0 0.0
    %94 = vmatpush1.msra.mxu0 %v45
    %95 = vmatprep.subr.mxu0 0.0
    %96 = vmatpush2.msra.mxu0 0.0
    %97 = vmatprep.subr.mxu0 0.0
    %98 = vmatpush2.msra.mxu0 0.0
    %99 = vmatprep.subr.mxu0 0.0
    %100 = vmatpush2.msra.mxu0 0.0
    %101 = vmatprep.subr.mxu0 0.0
    %102 = vmatpush2.msra.mxu0 0.0
    %103 = vmatprep.subr.mxu0 0.0
    %104 = vmatpush2.msra.mxu0 0.0
    %105 = vmatprep.subr.mxu0 0.0
    %106 = vmatpush2.msra.mxu0 0.0
    %107 = vmatprep.subr.mxu0 0.0
    %108 = vmatpush2.msra.mxu0 0.0
    %109 = vmatprep.subr.mxu0 0.0
    %110 = vmatpush2.msra.mxu0 0.0
    %111 = vmatprep.subr.mxu0 0.0
    %112 = vmatpush2.msra.mxu0 0.0
    %113 = vmatprep.subr.mxu0 0.0
    %114 = vmatpush2.msra.mxu0 0.0
    %115 = vmatprep.subr.mxu0 0.0
    %116 = vmatpush2.msra.mxu0 0.0
    %117 = vmatprep.subr.mxu0 0.0
    %118 = vmatpush2.msra.mxu0 0.0
    %119 = vmatprep.subr.mxu0 0.0
    %120 = vmatpush2.msra.mxu0 0.0
    %121 = vmatprep.subr.mxu0 0.0
    %122 = vmatpush2.msra.mxu0 0.0
    %123 = vmatprep.subr.mxu0 0.0
    %124 = vmatpush2.msra.mxu0 0.0
    %125 = vmatprep.subr.mxu0 0.0
    %126 = vmatpush2.msra.mxu0 0.0
    %127 = vmatprep.mubr.f32.mxu0 0.0
    %128 = vmatmul.mubr.f32.gmra.mxu0 %v58
    %v129 = vpop.f32.mrf.mxu0
    %v130 = vadd.f32 %v54, %v129
    %v131 = vpop.f32.mrf.mxu0
    %132 = vmatprep.mubr.f32.mxu0 0.0
    %133 = vmatmul.mubr.f32.gmra.mxu0 %v61
    %v134 = vpop.f32.mrf.mxu0
    %v135 = vadd.f32 %v54, %v134
    %v136 = vpop.f32.mrf.mxu0
    %137 = vdwg.mxu0
    %v138 = vmax.f32 %v130, 0.0
    %v139 = vmax.f32 %v135, 0.0
    %vm140 = vcmask 523264
    %141 = vst.msk [vmem:[#allocation7] sm:$0xff] %vm140, %v138
    %142 = vst.msk [vmem:[#allocation7 + $0x8] sm:$0xff] %vm140, %v139
    // Predicated region
    $region22: #{tpu_custom_call.1} parent=1 // pred_check
      _
    $region23: #{tpu_custom_call.1} parent=1 // pred_check_branch
      %144 = sbr.rel (0) target = $region25
    $region24: #{tpu_custom_call.1} parent=1 // pred_region
      %s146 = ssub.s32 256, 256
      %147 = vsyncadd [#allocation4], %s146
      %s148 = sshll.u32 [#allocation7], 4
      %s149 = int_to_ptr.vmem [resolvable:$true] %s148
      %154 = dma.vmem_to_hbm [thread:$0]  %s149, 256, %s3, [#allocation4], 128, 128, 8
    $region25: #{tpu_custom_call.1} parent=1 // pred_fallthru
      _
    // Predicated region
    $region26: #{tpu_custom_call.1} parent=1 // pred_check
      _
    $region27: #{tpu_custom_call.1} parent=1 // pred_check_branch
      %156 = sbr.rel (0) target = $region29
    $region28: #{tpu_custom_call.1} parent=1 // pred_region
      %157 = dma.done [#allocation4], 256
    $region29: #{tpu_custom_call.1} parent=1 // pred_fallthru
      _
    %158 = vsyncpa [#allocation3], 1
    %159 = vsyncpa [#allocation6], 1
    %160 = vsyncpa [#allocation4], 1

</llo_original>
